<compile_context>
chip_gen: v7x
topology: tpu7x:2x2x1
jax: 0.10.0
libtpu: 0.0.40
codegen_flags: <defaults>
</compile_context>

<pallas_src>
import functools
import math

import jax
import jax.numpy as jnp
from jax import lax
from jax.experimental import pallas as pl
from jax.experimental.pallas import tpu as pltpu


# ---------------------------------------------------------------------------
# Small helpers
# ---------------------------------------------------------------------------
def _round_up(x, m):
    return (x + m - 1) // m * m


def _row_tile(n, max_rows, align=8):
    """Largest row tile <= max_rows that is a multiple of `align` and divides n (else n)."""
    t = min(n, max_rows)
    t -= t % align
    while t >= align:
        if n % t == 0:
            return t
        t -= align
    return n


def _default_vmem_limit():
    # Raise the scoped-VMEM limit where physical VMEM allows it (v5e/v6e: 128 MiB),
    # stay conservative on v7x (64 MiB physical).  Falls back to 32 MiB.
    try:
        phys = pltpu.get_tpu_info().vmem_capacity_bytes
        return 64 * 2 ** 20 if phys >= 100 * 2 ** 20 else 40 * 2 ** 20
    except Exception:
        return 32 * 2 ** 20


VMEM_LIMIT = _default_vmem_limit()


# ---------------------------------------------------------------------------
# Pallas kernels
# ---------------------------------------------------------------------------
def _pool_proj_kernel(tok_ref, mask_ref, w_ref, b_ref, out_ref):
    # tok: [tn, S, D] bf16, mask: [tn, S] f32, w: [D, Dp] bf16, b: [1, Dp] f32
    tok = tok_ref[...]
    m = mask_ref[...]
    num = jnp.sum(tok * m[:, :, None], axis=1)                        # f32 [tn, D]
    inv_den = pl.reciprocal(
        jnp.maximum(jnp.sum(m, axis=1, keepdims=True), 1.0), approx=True)
    pooled = (num * inv_den).astype(jnp.bfloat16)
    out_ref[...] = (
        jnp.dot(pooled, w_ref[...], preferred_element_type=jnp.float32) + b_ref[...]
    )


def _make_fused_linear_kernel(n_in, n_out):
    """out[k] = sum_j x[j] @ w[j][k] + b[k]   (bf16 MXU operands, f32 accumulation)."""

    def kernel(*refs):
        xs = refs[:n_in]
        w_off = n_in
        b_off = w_off + n_in * n_out
        o_off = b_off + n_out
        x_bf = [x[...].astype(jnp.bfloat16) for x in xs]
        for k in range(n_out):
            acc = refs[b_off + k][...]                                # [1, Nk] f32
            for j in range(n_in):
                acc = acc + jnp.dot(x_bf[j], refs[w_off + j * n_out + k][...],
                                    preferred_element_type=jnp.float32)
            out_ref = refs[o_off + k]
            out_ref[...] = acc.astype(out_ref.dtype)

    return kernel


def _make_bigru_kernel(T, TC, Hp):
    """Bidirectional GRU recurrence over one time chunk of size TC.

    gi_f / gi_b : [TC, B, 3Hp] bf16  (precomputed x @ W_ih + b_ih, fwd / bwd chunk)
    lens        : [B, 1] int32
    whh_bd      : [2Hp, 6Hp] bf16 block-diagonal (fwd | bwd)
    bhh         : [1, 6Hp] f32
    y_f / y_b   : [TC, B, Hp] f32 outputs (bwd chunk is the time-reversed one)
    h_scr       : [B, 2Hp] f32 scratch, persists across grid steps (fwd | bwd state)
    """
    G = 3 * Hp

    def kernel(gi_f_ref, gi_b_ref, lens_ref, whh_ref, bhh_ref,
               y_f_ref, y_b_ref, h_scr):
        c = pl.program_id(0)

        @pl.when(c == 0)
        def _():
            h_scr[...] = jnp.zeros_like(h_scr)

        # Loop-invariant loads hoisted out of the recurrence.
        lens = lens_ref[...]                                          # [B, 1] int32
        whh = whh_ref[...]                                            # [2Hp, 2G] bf16
        bhh = bhh_ref[...]                                            # [1, 2G] f32
        t0 = c * TC

        def step(i, carry):
            h_prev = h_scr[...]                                       # [B, 2Hp] f32
            # One fused block-diagonal hh matmul for both directions (bf16 MXU, f32 acc).
            gh = jnp.dot(h_prev.astype(jnp.bfloat16), whh,
                         preferred_element_type=jnp.float32) + bhh    # [B, 2G]

            gi_f = gi_f_ref[i].astype(jnp.float32)                    # [B, G]
            gi_b = gi_b_ref[TC - 1 - i].astype(jnp.float32)           # [B, G]

            # ---- forward direction, global time t_f ----
            t_f = t0 + i
            r_f = jax.nn.sigmoid(gi_f[:, 0:Hp] + gh[:, 0:Hp])
            z_f = jax.nn.sigmoid(gi_f[:, Hp:2 * Hp] + gh[:, Hp:2 * Hp])
            n_f = jnp.tanh(gi_f[:, 2 * Hp:G] + r_f * gh[:, 2 * Hp:G])
            hf_prev = h_prev[:, 0:Hp]
            hf_new = (1.0 - z_f) * n_f + z_f * hf_prev

            # ---- backward direction, global time t_b = T-1-t_f (in-kernel reverse) ----
            t_b = T - 1 - t_f
            r_b = jax.nn.sigmoid(gi_b[:, 0:Hp] + gh[:, G:G + Hp])
            z_b = jax.nn.sigmoid(gi_b[:, Hp:2 * Hp] + gh[:, G + Hp:G + 2 * Hp])
            n_b = jnp.tanh(gi_b[:, 2 * Hp:G] + r_b * gh[:, G + 2 * Hp:2 * G])
            hb_prev = h_prev[:, Hp:2 * Hp]
            hb_new = (1.0 - z_b) * n_b + z_b * hb_prev

            valid_f = lens > t_f                                      # [B, 1] bool
            valid_b = lens > t_b
            # Freeze state past the sequence length (pack_padded semantics)...
            h_scr[:, 0:Hp] = jnp.where(valid_f, hf_new, hf_prev)
            h_scr[:, Hp:2 * Hp] = jnp.where(valid_b, hb_new, hb_prev)
            # ...and emit zeros there (pad_packed_sequence semantics).
            y_f_ref[i] = jnp.where(valid_f, hf_new, 0.0).astype(y_f_ref.dtype)
            y_b_ref[TC - 1 - i] = jnp.where(valid_b, hb_new, 0.0).astype(y_b_ref.dtype)
            return carry

        lax.fori_loop(0, TC, step, 0)

    return kernel


# ---------------------------------------------------------------------------
# Kernel wrappers
# ---------------------------------------------------------------------------
def pool_proj(tok, mask, w, b):
    """Masked mean pool over seq + projection.  tok: [N, S, D] bf16 -> [N, Dp] f32."""
    n, s, d = tok.shape
    dp = w.shape[1]
    bytes_per_row = s * (2 * d + 4) + 4 * dp
    max_rows = max(8, (8 * 2 ** 20) // max(bytes_per_row, 1))
    tn = _row_tile(n, max_rows, align=8)
    return pl.pallas_call(
        _pool_proj_kernel,
        out_shape=jax.ShapeDtypeStruct((n, dp), jnp.float32),
        grid=(n // tn,),
        in_specs=[
            pl.BlockSpec((tn, s, d), lambda i: (i, 0, 0)),
            pl.BlockSpec((tn, s), lambda i: (i, 0)),
            pl.BlockSpec((d, dp), lambda i: (0, 0)),
            pl.BlockSpec((1, dp), lambda i: (0, 0)),
        ],
        out_specs=pl.BlockSpec((tn, dp), lambda i: (i, 0)),
        compiler_params=pltpu.CompilerParams(
            dimension_semantics=("parallel",),
            vmem_limit_bytes=VMEM_LIMIT),
    )(tok, mask, w, b)


def fused_linear(xs, ws, bs, out_dtypes, *, max_rows=1024):
    """Row-tiled multi-input / multi-output linear: out[k] = sum_j xs[j] @ ws[j][k] + bs[k].

    xs: list of [M, Kj] (f32); ws[j][k]: [Kj, Nk] bf16 (pre-cast at init);
    bs[k]: [1, Nk] f32.  Every Nk is a multiple of 128 (lane-dense stores).
    """
    n_in, n_out = len(xs), len(bs)
    m = xs[0].shape[0]
    ns = [bk.shape[1] for bk in bs]
    tm = _row_tile(m, max_rows, align=16)     # bf16-friendly sublane packing

    in_specs, args = [], []
    for x in xs:
        kx = x.shape[1]
        in_specs.append(pl.BlockSpec((tm, kx), lambda i: (i, 0)))
        args.append(x)
    for j in range(n_in):
        kj = xs[j].shape[1]
        for k in range(n_out):
            in_specs.append(pl.BlockSpec((kj, ns[k]), lambda i: (0, 0)))
            args.append(ws[j][k])
    for k in range(n_out):
        in_specs.append(pl.BlockSpec((1, ns[k]), lambda i: (0, 0)))
        args.append(bs[k])

    out_specs = tuple(pl.BlockSpec((tm, ns[k]), lambda i: (i, 0)) for k in range(n_out))
    out_shape = tuple(jax.ShapeDtypeStruct((m, ns[k]), out_dtypes[k]) for k in range(n_out))

    out = pl.pallas_call(
        _make_fused_linear_kernel(n_in, n_out),
        grid=(m // tm,),
        in_specs=in_specs,
        out_specs=out_specs,
        out_shape=out_shape,
        compiler_params=pltpu.CompilerParams(
            dimension_semantics=("parallel",),
            vmem_limit_bytes=VMEM_LIMIT),
    )(*args)
    if n_out == 1:
        return (out,) if not isinstance(out, (tuple, list)) else tuple(out)
    return tuple(out)


def _pick_time_chunk(T, B, Hp, budget_bytes=8 * 2 ** 20):
    # double-buffered: gi (bf16, 2 dirs, 3Hp) + y (f32, 2 dirs, Hp) per timestep
    per_t = 2 * B * (2 * 3 * Hp * 2 + 2 * Hp * 4)
    tc = min(T, max(1, budget_bytes // max(per_t, 1)))
    while tc > 1 and T % tc != 0:
        tc -= 1
    return max(tc, 1)


def bigru_layer(gi_f, gi_b, lens, whh_bd, bhh, *, T, B, Hp):
    """One bidirectional GRU layer given precomputed input projections.

    gi_f/gi_b: [T, B, 3Hp] bf16, lens: [B, 1] int32 -> (y_f, y_b): [T, B, Hp] f32.
    """
    G = 3 * Hp
    TC = _pick_time_chunk(T, B, Hp)
    nc = T // TC
    y_f, y_b = pl.pallas_call(
        _make_bigru_kernel(T, TC, Hp),
        grid=(nc,),
        in_specs=[
            pl.BlockSpec((TC, B, G), lambda c: (c, 0, 0)),              # fwd chunk c
            pl.BlockSpec((TC, B, G), lambda c: (nc - 1 - c, 0, 0)),     # bwd chunk reversed
            pl.BlockSpec((B, 1), lambda c: (0, 0)),
            pl.BlockSpec((2 * Hp, 2 * G), lambda c: (0, 0)),
            pl.BlockSpec((1, 2 * G), lambda c: (0, 0)),
        ],
        out_specs=(
            pl.BlockSpec((TC, B, Hp), lambda c: (c, 0, 0)),
            pl.BlockSpec((TC, B, Hp), lambda c: (nc - 1 - c, 0, 0)),
        ),
        out_shape=(jax.ShapeDtypeStruct((T, B, Hp), jnp.float32),
                   jax.ShapeDtypeStruct((T, B, Hp), jnp.float32)),
        scratch_shapes=[pltpu.VMEM((B, 2 * Hp), jnp.float32)],          # h state, persists
        compiler_params=pltpu.CompilerParams(
            dimension_semantics=("arbitrary",),
            vmem_limit_bytes=VMEM_LIMIT),
    )(gi_f, gi_b, lens, whh_bd, bhh)
    # TODO(synk): on v7x, split the two directions across the 2 TensorCores
    # (direction grid axis marked "parallel" / core_map) for ~2x recurrence throughput.
    return y_f, y_b


# ---------------------------------------------------------------------------
# Parameter init (deterministic, synthetic; padding + bf16 casts baked in once)
# ---------------------------------------------------------------------------
def init_params(key, nhid, nlayer, nclass, vocab=256):
    H = nhid // 2
    Hp = _round_up(H, 128)
    G = 3 * Hp
    Dp = _round_up(nhid, 128)
    Cp = _round_up(nclass, 128)

    keys = iter(jax.random.split(key, 8 + nlayer * 12))
    nk = lambda: next(keys)

    def u(shape, s):
        return jax.random.uniform(nk(), shape, jnp.float32, -s, s)

    def place_gate_cols(w):
        # w: [rows, 3H] -> [rows, G]; each gate block padded from H to Hp with zeros.
        rows = w.shape[0]
        out = jnp.zeros((rows, G), jnp.float32)
        for g in range(3):
            out = out.at[:, g * Hp:g * Hp + H].set(w[:, g * H:(g + 1) * H])
        return out

    def pad_rows(w, rows_pad):
        return jnp.pad(w, ((0, rows_pad - w.shape[0]), (0, 0)))

    kh = 1.0 / math.sqrt(H)
    kd = 1.0 / math.sqrt(nhid)

    params = {
        # TODO(synk): pretrained roberta-base (AutoModel) has no Pallas equivalent;
        # substituted with a deterministic token-embedding + masked-mean-pool + projection.
        "tok_emb": (jax.random.normal(nk(), (vocab, nhid), jnp.float32) * 0.02
                    ).astype(jnp.bfloat16),
        "bert_proj_w": jnp.pad(u((nhid, nhid), kd),
                               ((0, 0), (0, Dp - nhid))).astype(jnp.bfloat16),
        "bert_proj_b": jnp.pad(u((1, nhid), kd), ((0, 0), (0, Dp - nhid))),
        "speaker_emb": jnp.pad(jax.random.normal(nk(), (3, nhid), jnp.float32) * 0.02,
                               ((0, 0), (0, Dp - nhid))),
        "topic_emb": jnp.pad(jax.random.normal(nk(), (100, nhid), jnp.float32) * 0.02,
                             ((0, 0), (0, Dp - nhid))),
        "gru": [],
    }

    # fc split into fwd/bwd halves (consumes y_f | y_b directly), padded lane-dense.
    fc_w = u((nhid, nclass), kd)
    fc_b = u((1, nclass), kd)
    pad_c = ((0, 0), (0, Cp - nclass))
    params["fc_w_f"] = pad_rows(jnp.pad(fc_w[:H], pad_c), Hp).astype(jnp.bfloat16)
    params["fc_w_b"] = pad_rows(jnp.pad(fc_w[H:], pad_c), Hp).astype(jnp.bfloat16)
    params["fc_b"] = jnp.pad(fc_b, pad_c)

    for layer_idx in range(nlayer):
        layer = {}
        if layer_idx == 0:
            # single input of width Dp (pooled embeddings; rows >= nhid are zero)
            wih_f = pad_rows(place_gate_cols(u((nhid, 3 * H), kh)), Dp).astype(jnp.bfloat16)
            wih_b = pad_rows(place_gate_cols(u((nhid, 3 * H), kh)), Dp).astype(jnp.bfloat16)
            layer["w_in"] = [[wih_f, wih_b]]
        else:
            # two inputs (y_f, y_b) of width Hp each (rows >= H are zero)
            def piece():
                return pad_rows(place_gate_cols(u((H, 3 * H), kh)), Hp).astype(jnp.bfloat16)
            layer["w_in"] = [[piece(), piece()], [piece(), piece()]]
        layer["b_in"] = [place_gate_cols(u((1, 3 * H), kh)),
                         place_gate_cols(u((1, 3 * H), kh))]

        whh_f = pad_rows(place_gate_cols(u((H, 3 * H), kh)), Hp)
        whh_b = pad_rows(place_gate_cols(u((H, 3 * H), kh)), Hp)
        whh_bd = jnp.zeros((2 * Hp, 2 * G), jnp.float32)
        whh_bd = whh_bd.at[:Hp, :G].set(whh_f).at[Hp:, G:].set(whh_b)
        layer["whh_bd"] = whh_bd.astype(jnp.bfloat16)
        layer["bhh"] = jnp.concatenate([place_gate_cols(u((1, 3 * H), kh)),
                                        place_gate_cols(u((1, 3 * H), kh))], axis=1)
        params["gru"].append(layer)
    return params


# ---------------------------------------------------------------------------
# Forward pass (mirrors BertRNN.forward, eval mode)
# ---------------------------------------------------------------------------
def bert_rnn_forward(params, input_ids, attention_mask, chunk_lens, speaker_ids,
                     topic_labels, *, nclass, speaker_info="none", topic_info="none"):
    B, C, S = input_ids.shape
    Dp = params["bert_proj_w"].shape[1]
    Hp = params["fc_w_f"].shape[0]
    T = C

    ids = input_ids.reshape(-1, S)
    mask = attention_mask.reshape(-1, S).astype(jnp.float32)

    # --- surrogate BERT CLS embeddings: masked mean pool + projection (Pallas) ---
    # TODO(synk): fuse this embedding gather into pool_proj (scalar-prefetch row gather)
    # instead of materializing the [N, S, nhid] intermediate through HBM.
    tok = params["tok_emb"][ids]                                       # [N, S, nhid] bf16
    emb = pool_proj(tok, mask, params["bert_proj_w"], params["bert_proj_b"])  # [N, Dp] f32
    # dropout: identity (eval mode)

    if speaker_info == "emb_cls":
        emb = emb + params["speaker_emb"][speaker_ids.reshape(-1)]
    if topic_info == "emb_cls":
        emb = emb + params["topic_emb"][topic_labels.reshape(-1)]

    emb = emb.reshape(B, C, Dp).transpose(1, 0, 2)                     # [T, B, Dp] time-major
    lens = chunk_lens.reshape(B, 1).astype(jnp.int32)

    # --- bidirectional GRU with pack/pad semantics (length masking in-kernel) ---
    xs = [emb.reshape(T * B, Dp)]
    for layer in params["gru"]:
        gi_f, gi_b = fused_linear(xs, layer["w_in"], layer["b_in"],
                                  out_dtypes=(jnp.bfloat16, jnp.bfloat16))
        G = gi_f.shape[1]
        y_f, y_b = bigru_layer(gi_f.reshape(T, B, G), gi_b.reshape(T, B, G),
                               lens, layer["whh_bd"], layer["bhh"], T=T, B=B, Hp=Hp)
        xs = [y_f.reshape(T * B, Hp), y_b.reshape(T * B, Hp)]
        # inter-layer / output dropout: identity (eval mode)

    # --- fc consumes (y_f, y_b) directly; output padded lane-dense, sliced back ---
    (logits_p,) = fused_linear(xs, [[params["fc_w_f"]], [params["fc_w_b"]]],
                               [params["fc_b"]], out_dtypes=(jnp.float32,))
    logits = logits_p[:, :nclass]
    logits = logits.reshape(T, B, nclass).transpose(1, 0, 2).reshape(-1, nclass)
    return logits


# ---------------------------------------------------------------------------
if __name__ == "__main__":
    B, C, S = 2, 8, 16          # batch, chunk_size, seq_len
    nhid, nlayer, nclass = 32, 2, 4
    vocab = 256

    key = jax.random.PRNGKey(0)
    kp, k1, k2, k3, k4 = jax.random.split(key, 5)

    params = init_params(kp, nhid, nlayer, nclass, vocab=vocab)

    input_ids = jax.random.randint(k1, (B, C, S), 0, vocab, dtype=jnp.int32)
    attention_mask = (jnp.arange(S)[None, None, :] < 12).astype(jnp.int32)
    attention_mask = jnp.broadcast_to(attention_mask, (B, C, S))
    chunk_lens = jnp.array([C, 5], dtype=jnp.int32)
    speaker_ids = jax.random.randint(k3, (B, C), 0, 3, dtype=jnp.int32)
    topic_labels = jax.random.randint(k4, (B, C), 0, 100, dtype=jnp.int32)

    fwd = functools.partial(bert_rnn_forward, nclass=nclass,
                            speaker_info="none", topic_info="none")
    out = fwd(params, input_ids, attention_mask, chunk_lens, speaker_ids, topic_labels)
    out = jax.block_until_ready(out)

    assert out.shape == (B * C, nclass), out.shape
    assert bool(jnp.all(jnp.isfinite(out)))
    print("KERNEL_OK")
</pallas_src>

<mosaic_0001>
module attributes {stable_mosaic.version = 11 : i64} {
  func.func @_pool_proj_kernel(%arg0: i32, %arg1: memref<16x16x32xbf16, #tpu.memory_space<vmem>>, %arg2: memref<16x16xf32, #tpu.memory_space<vmem>>, %arg3: memref<32x128xbf16, #tpu.memory_space<vmem>>, %arg4: memref<1x128xf32, #tpu.memory_space<vmem>>, %arg5: memref<16x128xf32, #tpu.memory_space<vmem>>) attributes {dimension_semantics = [#tpu.dimension_semantics<parallel>], iteration_bounds = array<i64: 1>, scalar_prefetch = 0 : i64, scratch_operands = 0 : i64, tpu.core_type = #tpu.core_type<tc>, window_params = [{transform_indices = @transform_0, window_bounds = array<i64: 16, 16, 32>}, {transform_indices = @transform_1, window_bounds = array<i64: 16, 16>}, {pipeline_mode = #tpu.pipeline_mode<synchronous>, transform_indices = @transform_2, window_bounds = array<i64: 32, 128>}, {pipeline_mode = #tpu.pipeline_mode<synchronous>, transform_indices = @transform_3, window_bounds = array<i64: 1, 128>}, {transform_indices = @transform_4, window_bounds = array<i64: 16, 128>}]} {
    %c0 = arith.constant 0 : index
    %c0_0 = arith.constant 0 : index
    %c0_1 = arith.constant 0 : index
    %0 = vector.load %arg1[%c0, %c0_0, %c0_1] : memref<16x16x32xbf16, #tpu.memory_space<vmem>>, vector<16x16x32xbf16>
    %c0_2 = arith.constant 0 : index
    %c0_3 = arith.constant 0 : index
    %1 = vector.load %arg2[%c0_2, %c0_3] : memref<16x16xf32, #tpu.memory_space<vmem>>, vector<16x16xf32>
    %2 = vector.shape_cast %1 : vector<16x16xf32> to vector<16x16x1xf32>
    %3 = arith.extf %0 : vector<16x16x32xbf16> to vector<16x16x32xf32>
    %4 = vector.broadcast %2 : vector<16x16x1xf32> to vector<16x16x32xf32>
    %5 = arith.mulf %3, %4 : vector<16x16x32xf32>
    %cst = arith.constant dense<0.000000e+00> : vector<16x32xf32>
    %6 = vector.multi_reduction <add>, %5, %cst [1] : vector<16x16x32xf32> to vector<16x32xf32>
    %cst_4 = arith.constant dense<0.000000e+00> : vector<16xf32>
    %7 = vector.multi_reduction <add>, %1, %cst_4 [1] : vector<16x16xf32> to vector<16xf32>
    %8 = vector.shape_cast %7 : vector<16xf32> to vector<16x1xf32>
    %cst_5 = arith.constant 1.000000e+00 : f32
    %9 = vector.broadcast %cst_5 : f32 to vector<16x1xf32>
    %10 = arith.maximumf %8, %9 : vector<16x1xf32>
    %11 = tpu.reciprocal %10 {approx = true} : vector<16x1xf32> -> vector<16x1xf32>
    %12 = vector.broadcast %11 : vector<16x1xf32> to vector<16x32xf32>
    %13 = arith.mulf %6, %12 : vector<16x32xf32>
    %14 = arith.truncf %13 : vector<16x32xf32> to vector<16x32xbf16>
    %c0_6 = arith.constant 0 : index
    %c0_7 = arith.constant 0 : index
    %15 = vector.load %arg3[%c0_6, %c0_7] : memref<32x128xbf16, #tpu.memory_space<vmem>>, vector<32x128xbf16>
    %cst_8 = arith.constant dense<0.000000e+00> : vector<16x128xf32>
    %16 = tpu.matmul %14, %15, %cst_8 {dimension_numbers = #tpu.dot_dimension_numbers<[1], [0], [0], [1], [0, 0, 1, 1], [], []>} : vector<16x32xbf16>, vector<32x128xbf16>, vector<16x128xf32> -> vector<16x128xf32>
    %c0_9 = arith.constant 0 : index
    %c0_10 = arith.constant 0 : index
    %17 = vector.load %arg4[%c0_9, %c0_10] : memref<1x128xf32, #tpu.memory_space<vmem>>, vector<1x128xf32>
    %18 = vector.broadcast %17 : vector<1x128xf32> to vector<16x128xf32>
    %19 = arith.addf %16, %18 : vector<16x128xf32>
    %c0_11 = arith.constant 0 : index
    %c0_12 = arith.constant 0 : index
    %20 = vector.load %arg5[%c0_11, %c0_12] : memref<16x128xf32, #tpu.memory_space<vmem>>, vector<16x128xf32>
    tpu.vector_store %arg5[%c0_11, %c0_12], %19 {strides = array<i32>} : memref<16x128xf32, #tpu.memory_space<vmem>>, vector<16x128xf32>,
    return
  }
  func.func @transform_0(%arg0: i32) -> (i32, i32, i32) {
    %c0_i32 = arith.constant 0 : i32
    %c0_i32_0 = arith.constant 0 : i32
    %c0_i32_1 = arith.constant 0 : i32
    return %arg0, %c0_i32, %c0_i32_0 : i32, i32, i32
  }
  func.func @transform_1(%arg0: i32) -> (i32, i32) {
    %c0_i32 = arith.constant 0 : i32
    %c0_i32_0 = arith.constant 0 : i32
    return %arg0, %c0_i32 : i32, i32
  }
  func.func @transform_2(%arg0: i32) -> (i32, i32) {
    %c0_i32 = arith.constant 0 : i32
    %c0_i32_0 = arith.constant 0 : i32
    %c0_i32_1 = arith.constant 0 : i32
    return %c0_i32, %c0_i32_0 : i32, i32
  }
  func.func @transform_3(%arg0: i32) -> (i32, i32) {
    %c0_i32 = arith.constant 0 : i32
    %c0_i32_0 = arith.constant 0 : i32
    %c0_i32_1 = arith.constant 0 : i32
    return %c0_i32, %c0_i32_0 : i32, i32
  }
  func.func @transform_4(%arg0: i32) -> (i32, i32) {
    %c0_i32 = arith.constant 0 : i32
    %c0_i32_0 = arith.constant 0 : i32
    return %arg0, %c0_i32 : i32, i32
  }
}

</mosaic_0001>

<llo_original>
// kernel: tpu_custom_call.1
$region0: #{tpu_custom_call.1}
  #allocation0 [shape = 'u32[]', space=smem, size = 0x4, offset = 0x4, fixed_abs, tag = 'smem constant byte address 0x4 - core index']
  #allocation1 [shape = 'u32[144,128]{1,0:T(1,128)}', space=vmem, size = 0x12000, scoped, tag = 'internal scratch']
  %s0 = inlined_call_operand.hbm [shape: bf16[16,16,32], index: 0, kind: input, shape index: {}]
  %s1 = inlined_call_operand.hbm [shape: f32[16,16], index: 1, kind: input, shape index: {}]
  %s2 = inlined_call_operand.hbm [shape: bf16[32,128], index: 2, kind: input, shape index: {}]
  %s3 = inlined_call_operand.vmem [shape: f32[1,128], index: 3, kind: input, shape index: {}]
  %s4 = inlined_call_operand.hbm [shape: f32[16,128], index: 4, kind: output, shape index: {}]
  %s5 = sld [smem:[#allocation0]]
  $region38: #{tpu_custom_call.1} parent=0
    _
  %s7 = ssub.s32 1, %s5
  %s8 = scalar_select 0, %s7, %s5
  $region1: #{tpu_custom_call.1} parent=0
    #allocation2 [shape = 'u8[65536]{0}', space=vmem, size = 0x10000, scoped, tag = 'input window, operand 0, single buffered']
    #allocation3 [shape = 's32[1]{0}', space=sflag, size = 0x4, scoped, tag = 'scoped memory for tpu_custom_call.1']
    #allocation4 [shape = 's32[1]{0}', space=sflag, size = 0x4, scoped, tag = 'scoped memory for tpu_custom_call.1']
    #allocation5 [shape = 'u8[8192]{0}', space=vmem, size = 0x2000, scoped, tag = 'input window, operand 1, single buffered']
    #allocation6 [shape = 's32[1]{0}', space=sflag, size = 0x4, scoped, tag = 'scoped memory for tpu_custom_call.1']
    #allocation7 [shape = 'u8[8192]{0}', space=vmem, size = 0x2000, scoped, tag = 'input window, operand 2, single buffered']
    #allocation8 [shape = 'u8[8192]{0}', space=vmem, size = 0x2000, scoped, tag = 'output window, operand 0, single buffered']
    %9 = vsyncpa [#allocation3], 0
    %10 = vsyncpa [#allocation6], 0
    %11 = vsyncpa [#allocation4], 0
    // Predicated region
    $region2: #{tpu_custom_call.1} parent=1 // pred_check
      _
    $region3: #{tpu_custom_call.1} parent=1 // pred_check_branch
      %13 = sbr.rel (0) target = $region5
    $region4: #{tpu_custom_call.1} parent=1 // pred_region
      %s15 = ssub.s32 2048, 2048
      %16 = vsyncadd [#allocation3], %s15
      %s17 = sshll.u32 [#allocation2], 4
      %s18 = int_to_ptr.vmem [resolvable:$true] %s17
      %23 = dma.hbm_to_vmem [thread:$0]  %s0, 2048, %s18, [#allocation3], 64, 64, 4
    $region5: #{tpu_custom_call.1} parent=1 // pred_fallthru
      _
    // Predicated region
    $region6: #{tpu_custom_call.1} parent=1 // pred_check
      _
    $region7: #{tpu_custom_call.1} parent=1 // pred_check_branch
      %25 = sbr.rel (0) target = $region9
    $region8: #{tpu_custom_call.1} parent=1 // pred_region
      %s27 = ssub.s32 256, 256
      %28 = vsyncadd [#allocation6], %s27
      %s29 = sshll.u32 [#allocation5], 4
      %s30 = int_to_ptr.vmem [resolvable:$true] %s29
      %35 = dma.hbm_to_vmem [thread:$0]  %s1, 256, %s30, [#allocation6], 128, 128, 8
    $region9: #{tpu_custom_call.1} parent=1 // pred_fallthru
      _
    // Predicated region
    $region10: #{tpu_custom_call.1} parent=1 // pred_check
      _
    $region11: #{tpu_custom_call.1} parent=1 // pred_check_branch
      %37 = sbr.rel (0) target = $region13
    $region12: #{tpu_custom_call.1} parent=1 // pred_region
      %s39 = ssub.s32 256, 256
      %40 = vsyncadd [#allocation6], %s39
      %s41 = sshll.u32 [#allocation7], 4
      %s42 = int_to_ptr.vmem [resolvable:$true] %s41
      %47 = dma.hbm_to_vmem [thread:$0]  %s2, 256, %s42, [#allocation6], 64, 64, 4
    $region13: #{tpu_custom_call.1} parent=1 // pred_fallthru
      _
    // Predicated region
    $region14: #{tpu_custom_call.1} parent=1 // pred_check
      _
    $region15: #{tpu_custom_call.1} parent=1 // pred_check_branch
      %49 = sbr.rel (0) target = $region17
    $region16: #{tpu_custom_call.1} parent=1 // pred_region
      _
    $region17: #{tpu_custom_call.1} parent=1 // pred_fallthru
      _
    // Predicated region
    $region18: #{tpu_custom_call.1} parent=1 // pred_check
      _
    $region19: #{tpu_custom_call.1} parent=1 // pred_check_branch
      %51 = sbr.rel (0) target = $region21
    $region20: #{tpu_custom_call.1} parent=1 // pred_region
      %52 = dma.done [#allocation3], 2048
    $region21: #{tpu_custom_call.1} parent=1 // pred_fallthru
      _
    // Predicated region
    $region22: #{tpu_custom_call.1} parent=1 // pred_check
      _
    $region23: #{tpu_custom_call.1} parent=1 // pred_check_branch
      %54 = sbr.rel (0) target = $region25
    $region24: #{tpu_custom_call.1} parent=1 // pred_region
      %55 = dma.done [#allocation6], 256
    $region25: #{tpu_custom_call.1} parent=1 // pred_fallthru
      _
    // Predicated region
    $region26: #{tpu_custom_call.1} parent=1 // pred_check
      _
    $region27: #{tpu_custom_call.1} parent=1 // pred_check_branch
      %57 = sbr.rel (0) target = $region29
    $region28: #{tpu_custom_call.1} parent=1 // pred_region
      %58 = dma.done [#allocation6], 256
    $region29: #{tpu_custom_call.1} parent=1 // pred_fallthru
      _
    %v60 = vld [vmem:[#allocation2] sm:$0xf]
    %v61 = vld [vmem:[#allocation2 + $0x4] sm:$0xf]
    %v62 = vld [vmem:[#allocation2 + $0x8] sm:$0xf]
    %v63 = vld [vmem:[#allocation2 + $0xc] sm:$0xf]
    %v64 = vld [vmem:[#allocation2 + $0x10] sm:$0xf]
    %v65 = vld [vmem:[#allocation2 + $0x14] sm:$0xf]
    %v66 = vld [vmem:[#allocation2 + $0x18] sm:$0xf]
    %v67 = vld [vmem:[#allocation2 + $0x1c] sm:$0xf]
    %v68 = vld [vmem:[#allocation2 + $0x20] sm:$0xf]
    %v69 = vld [vmem:[#allocation2 + $0x24] sm:$0xf]
    %v70 = vld [vmem:[#allocation2 + $0x28] sm:$0xf]
    %v71 = vld [vmem:[#allocation2 + $0x2c] sm:$0xf]
    %v72 = vld [vmem:[#allocation2 + $0x30] sm:$0xf]
    %v73 = vld [vmem:[#allocation2 + $0x34] sm:$0xf]
    %v74 = vld [vmem:[#allocation2 + $0x38] sm:$0xf]
    %v75 = vld [vmem:[#allocation2 + $0x3c] sm:$0xf]
    %v76 = vld [vmem:[#allocation2 + $0x40] sm:$0xf]
    %v77 = vld [vmem:[#allocation2 + $0x44] sm:$0xf]
    %v78 = vld [vmem:[#allocation2 + $0x48] sm:$0xf]
    %v79 = vld [vmem:[#allocation2 + $0x4c] sm:$0xf]
    %v80 = vld [vmem:[#allocation2 + $0x50] sm:$0xf]
    %v81 = vld [vmem:[#allocation2 + $0x54] sm:$0xf]
    %v82 = vld [vmem:[#allocation2 + $0x58] sm:$0xf]
    %v83 = vld [vmem:[#allocation2 + $0x5c] sm:$0xf]
    %v84 = vld [vmem:[#allocation2 + $0x60] sm:$0xf]
    %v85 = vld [vmem:[#allocation2 + $0x64] sm:$0xf]
    %v86 = vld [vmem:[#allocation2 + $0x68] sm:$0xf]
    %v87 = vld [vmem:[#allocation2 + $0x6c] sm:$0xf]
    %v88 = vld [vmem:[#allocation2 + $0x70] sm:$0xf]
    %v89 = vld [vmem:[#allocation2 + $0x74] sm:$0xf]
    %v90 = vld [vmem:[#allocation2 + $0x78] sm:$0xf]
    %v91 = vld [vmem:[#allocation2 + $0x7c] sm:$0xf]
    %v92 = vld [vmem:[#allocation5] sm:$0xff]
    %v93 = vld [vmem:[#allocation5 + $0x8] sm:$0xff]
    %v94 = vlaneseq
    %v95 = vshrl.u32 %v94, 7
    %v96 = vsub.s32 0, %v95
    %v97 = vrot.slane %v92, %v96
    %99 = vbcast.lane.b32.xlu0 %v97, 256
    %v100 = vpop.permute.xlu0 %99
    %s102 = sor.u32 256, 8
    %103 = vbcast.lane.b32.xlu0 %v97, %s102
    %v104 = vpop.permute.xlu0 %103
    %v105 = vlaneseq
    %v106 = vshrl.u32 %v105, 7
    %v107 = vsub.s32 1, %v106
    %v108 = vrot.slane %v92, %v107
    %110 = vbcast.lane.b32.xlu0 %v108, 256
    %v111 = vpop.permute.xlu0 %110
    %s113 = sor.u32 256, 8
    %114 = vbcast.lane.b32.xlu0 %v108, %s113
    %v115 = vpop.permute.xlu0 %114
    %v116 = vlaneseq
    %v117 = vshrl.u32 %v116, 7
    %v118 = vsub.s32 2, %v117
    %v119 = vrot.slane %v92, %v118
    %121 = vbcast.lane.b32.xlu0 %v119, 256
    %v122 = vpop.permute.xlu0 %121
    %s124 = sor.u32 256, 8
    %125 = vbcast.lane.b32.xlu0 %v119, %s124
    %v126 = vpop.permute.xlu0 %125
    %v127 = vlaneseq
    %v128 = vshrl.u32 %v127, 7
    %v129 = vsub.s32 3, %v128
    %v130 = vrot.slane %v92, %v129
    %132 = vbcast.lane.b32.xlu0 %v130, 256
    %v133 = vpop.permute.xlu0 %132
    %s135 = sor.u32 256, 8
    %136 = vbcast.lane.b32.xlu0 %v130, %s135
    %v137 = vpop.permute.xlu0 %136
    %v138 = vlaneseq
    %v139 = vshrl.u32 %v138, 7
    %v140 = vsub.s32 4, %v139
    %v141 = vrot.slane %v92, %v140
    %143 = vbcast.lane.b32.xlu0 %v141, 256
    %v144 = vpop.permute.xlu0 %143
    %s146 = sor.u32 256, 8
    %147 = vbcast.lane.b32.xlu0 %v141, %s146
    %v148 = vpop.permute.xlu0 %147
    %v149 = vlaneseq
    %v150 = vshrl.u32 %v149, 7
    %v151 = vsub.s32 5, %v150
    %v152 = vrot.slane %v92, %v151
    %154 = vbcast.lane.b32.xlu0 %v152, 256
    %v155 = vpop.permute.xlu0 %154
    %s157 = sor.u32 256, 8
    %158 = vbcast.lane.b32.xlu0 %v152, %s157
    %v159 = vpop.permute.xlu0 %158
    %v160 = vlaneseq
    %v161 = vshrl.u32 %v160, 7
    %v162 = vsub.s32 6, %v161
    %v163 = vrot.slane %v92, %v162
    %165 = vbcast.lane.b32.xlu0 %v163, 256
    %v166 = vpop.permute.xlu0 %165
    %s168 = sor.u32 256, 8
    %169 = vbcast.lane.b32.xlu0 %v163, %s168
    %v170 = vpop.permute.xlu0 %169
    %v171 = vlaneseq
    %v172 = vshrl.u32 %v171, 7
    %v173 = vsub.s32 7, %v172
    %v174 = vrot.slane %v92, %v173
    %176 = vbcast.lane.b32.xlu0 %v174, 256
    %v177 = vpop.permute.xlu0 %176
    %s179 = sor.u32 256, 8
    %180 = vbcast.lane.b32.xlu0 %v174, %s179
    %v181 = vpop.permute.xlu0 %180
    %v182 = vlaneseq
    %v183 = vshrl.u32 %v182, 7
    %v184 = vsub.s32 0, %v183
    %v185 = vrot.slane %v93, %v184
    %187 = vbcast.lane.b32.xlu0 %v185, 256
    %v188 = vpop.permute.xlu0 %187
    %s190 = sor.u32 256, 8
    %191 = vbcast.lane.b32.xlu0 %v185, %s190
    %v192 = vpop.permute.xlu0 %191
    %v193 = vlaneseq
    %v194 = vshrl.u32 %v193, 7
    %v195 = vsub.s32 1, %v194
    %v196 = vrot.slane %v93, %v195
    %198 = vbcast.lane.b32.xlu0 %v196, 256
    %v199 = vpop.permute.xlu0 %198
    %s201 = sor.u32 256, 8
    %202 = vbcast.lane.b32.xlu0 %v196, %s201
    %v203 = vpop.permute.xlu0 %202
    %v204 = vlaneseq
    %v205 = vshrl.u32 %v204, 7
    %v206 = vsub.s32 2, %v205
    %v207 = vrot.slane %v93, %v206
    %209 = vbcast.lane.b32.xlu0 %v207, 256
    %v210 = vpop.permute.xlu0 %209
    %s212 = sor.u32 256, 8
    %213 = vbcast.lane.b32.xlu0 %v207, %s212
    %v214 = vpop.permute.xlu0 %213
    %v215 = vlaneseq
    %v216 = vshrl.u32 %v215, 7
    %v217 = vsub.s32 3, %v216
    %v218 = vrot.slane %v93, %v217
    %220 = vbcast.lane.b32.xlu0 %v218, 256
    %v221 = vpop.permute.xlu0 %220
    %s223 = sor.u32 256, 8
    %224 = vbcast.lane.b32.xlu0 %v218, %s223
    %v225 = vpop.permute.xlu0 %224
    %v226 = vlaneseq
    %v227 = vshrl.u32 %v226, 7
    %v228 = vsub.s32 4, %v227
    %v229 = vrot.slane %v93, %v228
    %231 = vbcast.lane.b32.xlu0 %v229, 256
    %v232 = vpop.permute.xlu0 %231
    %s234 = sor.u32 256, 8
    %235 = vbcast.lane.b32.xlu0 %v229, %s234
    %v236 = vpop.permute.xlu0 %235
    %v237 = vlaneseq
    %v238 = vshrl.u32 %v237, 7
    %v239 = vsub.s32 5, %v238
    %v240 = vrot.slane %v93, %v239
    %242 = vbcast.lane.b32.xlu0 %v240, 256
    %v243 = vpop.permute.xlu0 %242
    %s245 = sor.u32 256, 8
    %246 = vbcast.lane.b32.xlu0 %v240, %s245
    %v247 = vpop.permute.xlu0 %246
    %v248 = vlaneseq
    %v249 = vshrl.u32 %v248, 7
    %v250 = vsub.s32 6, %v249
    %v251 = vrot.slane %v93, %v250
    %253 = vbcast.lane.b32.xlu0 %v251, 256
    %v254 = vpop.permute.xlu0 %253
    %s256 = sor.u32 256, 8
    %257 = vbcast.lane.b32.xlu0 %v251, %s256
    %v258 = vpop.permute.xlu0 %257
    %v259 = vlaneseq
    %v260 = vshrl.u32 %v259, 7
    %v261 = vsub.s32 7, %v260
    %v262 = vrot.slane %v93, %v261
    %264 = vbcast.lane.b32.xlu0 %v262, 256
    %v265 = vpop.permute.xlu0 %264
    %s267 = sor.u32 256, 8
    %268 = vbcast.lane.b32.xlu0 %v262, %s267
    %v269 = vpop.permute.xlu0 %268
    %v270 = vunpack.c.l.bf16 %v60
    %v271 = vunpack.c.l.bf16 %v61
    %v272 = vunpack.c.l.bf16 %v62
    %v273 = vunpack.c.l.bf16 %v63
    %v274 = vunpack.c.l.bf16 %v64
    %v275 = vunpack.c.l.bf16 %v65
    %v276 = vunpack.c.l.bf16 %v66
    %v277 = vunpack.c.l.bf16 %v67
    %v278 = vunpack.c.l.bf16 %v68
    %v279 = vunpack.c.l.bf16 %v69
    %v280 = vunpack.c.l.bf16 %v70
    %v281 = vunpack.c.l.bf16 %v71
    %v282 = vunpack.c.l.bf16 %v72
    %v283 = vunpack.c.l.bf16 %v73
    %v284 = vunpack.c.l.bf16 %v74
    %v285 = vunpack.c.l.bf16 %v75
    %v286 = vunpack.c.l.bf16 %v76
    %v287 = vunpack.c.l.bf16 %v77
    %v288 = vunpack.c.l.bf16 %v78
    %v289 = vunpack.c.l.bf16 %v79
    %v290 = vunpack.c.l.bf16 %v80
    %v291 = vunpack.c.l.bf16 %v81
    %v292 = vunpack.c.l.bf16 %v82
    %v293 = vunpack.c.l.bf16 %v83
    %v294 = vunpack.c.l.bf16 %v84
    %v295 = vunpack.c.l.bf16 %v85
    %v296 = vunpack.c.l.bf16 %v86
    %v297 = vunpack.c.l.bf16 %v87
    %v298 = vunpack.c.l.bf16 %v88
    %v299 = vunpack.c.l.bf16 %v89
    %v300 = vunpack.c.l.bf16 %v90
    %v301 = vunpack.c.l.bf16 %v91
    %v302 = vmul.f32 %v270, %v100
    %v303 = vmul.f32 %v271, %v104
    %v304 = vmul.f32 %v272, %v111
    %v305 = vmul.f32 %v273, %v115
    %v306 = vmul.f32 %v274, %v122
    %v307 = vmul.f32 %v275, %v126
    %v308 = vmul.f32 %v276, %v133
    %v309 = vmul.f32 %v277, %v137
    %v310 = vmul.f32 %v278, %v144
    %v311 = vmul.f32 %v279, %v148
    %v312 = vmul.f32 %v280, %v155
    %v313 = vmul.f32 %v281, %v159
    %v314 = vmul.f32 %v282, %v166
    %v315 = vmul.f32 %v283, %v170
    %v316 = vmul.f32 %v284, %v177
    %v317 = vmul.f32 %v285, %v181
    %v318 = vmul.f32 %v286, %v188
    %v319 = vmul.f32 %v287, %v192
    %v320 = vmul.f32 %v288, %v199
    %v321 = vmul.f32 %v289, %v203
    %v322 = vmul.f32 %v290, %v210
    %v323 = vmul.f32 %v291, %v214
    %v324 = vmul.f32 %v292, %v221
    %v325 = vmul.f32 %v293, %v225
    %v326 = vmul.f32 %v294, %v232
    %v327 = vmul.f32 %v295, %v236
    %v328 = vmul.f32 %v296, %v243
    %v329 = vmul.f32 %v297, %v247
    %v330 = vmul.f32 %v298, %v254
    %v331 = vmul.f32 %v299, %v258
    %v332 = vmul.f32 %v300, %v265
    %v333 = vmul.f32 %v301, %v269
    %vm334 = vcmask 261120
    %v335 = vsel %vm334, %v302, 0.0
    %v336 = vsel %vm334, %v303, 0.0
    %v337 = vadd.f32 %v335, %v336
    %v338 = vrot.slane %v337, 4
    %v339 = vadd.f32 %v337, %v338
    %v340 = vrot.slane %v339, 2
    %v341 = vadd.f32 %v339, %v340
    %v342 = vrot.slane %v341, 1
    %v343 = vadd.f32 %v341, %v342
    %v344 = vsel %vm334, %v304, 0.0
    %v345 = vsel %vm334, %v305, 0.0
    %v346 = vadd.f32 %v344, %v345
    %v347 = vrot.slane %v346, 4
    %v348 = vadd.f32 %v346, %v347
    %v349 = vrot.slane %v348, 2
    %v350 = vadd.f32 %v348, %v349
    %v351 = vrot.slane %v350, 1
    %v352 = vadd.f32 %v350, %v351
    %v353 = vsel %vm334, %v306, 0.0
    %v354 = vsel %vm334, %v307, 0.0
    %v355 = vadd.f32 %v353, %v354
    %v356 = vrot.slane %v355, 4
    %v357 = vadd.f32 %v355, %v356
    %v358 = vrot.slane %v357, 2
    %v359 = vadd.f32 %v357, %v358
    %v360 = vrot.slane %v359, 1
    %v361 = vadd.f32 %v359, %v360
    %v362 = vsel %vm334, %v308, 0.0
    %v363 = vsel %vm334, %v309, 0.0
    %v364 = vadd.f32 %v362, %v363
    %v365 = vrot.slane %v364, 4
    %v366 = vadd.f32 %v364, %v365
    %v367 = vrot.slane %v366, 2
    %v368 = vadd.f32 %v366, %v367
    %v369 = vrot.slane %v368, 1
    %v370 = vadd.f32 %v368, %v369
    %v371 = vsel %vm334, %v310, 0.0
    %v372 = vsel %vm334, %v311, 0.0
    %v373 = vadd.f32 %v371, %v372
    %v374 = vrot.slane %v373, 4
    %v375 = vadd.f32 %v373, %v374
    %v376 = vrot.slane %v375, 2
    %v377 = vadd.f32 %v375, %v376
    %v378 = vrot.slane %v377, 1
    %v379 = vadd.f32 %v377, %v378
    %v380 = vsel %vm334, %v312, 0.0
    %v381 = vsel %vm334, %v313, 0.0
    %v382 = vadd.f32 %v380, %v381
    %v383 = vrot.slane %v382, 4
    %v384 = vadd.f32 %v382, %v383
    %v385 = vrot.slane %v384, 2
    %v386 = vadd.f32 %v384, %v385
    %v387 = vrot.slane %v386, 1
    %v388 = vadd.f32 %v386, %v387
    %v389 = vsel %vm334, %v314, 0.0
    %v390 = vsel %vm334, %v315, 0.0
    %v391 = vadd.f32 %v389, %v390
    %v392 = vrot.slane %v391, 4
    %v393 = vadd.f32 %v391, %v392
    %v394 = vrot.slane %v393, 2
    %v395 = vadd.f32 %v393, %v394
    %v396 = vrot.slane %v395, 1
    %v397 = vadd.f32 %v395, %v396
    %v398 = vsel %vm334, %v316, 0.0
    %v399 = vsel %vm334, %v317, 0.0
    %v400 = vadd.f32 %v398, %v399
    %v401 = vrot.slane %v400, 4
    %v402 = vadd.f32 %v400, %v401
    %v403 = vrot.slane %v402, 2
    %v404 = vadd.f32 %v402, %v403
    %v405 = vrot.slane %v404, 1
    %v406 = vadd.f32 %v404, %v405
    %v407 = vsel %vm334, %v318, 0.0
    %v408 = vsel %vm334, %v319, 0.0
    %v409 = vadd.f32 %v407, %v408
    %v410 = vrot.slane %v409, 4
    %v411 = vadd.f32 %v409, %v410
    %v412 = vrot.slane %v411, 2
    %v413 = vadd.f32 %v411, %v412
    %v414 = vrot.slane %v413, 1
    %v415 = vadd.f32 %v413, %v414
    %v416 = vsel %vm334, %v320, 0.0
    %v417 = vsel %vm334, %v321, 0.0
    %v418 = vadd.f32 %v416, %v417
    %v419 = vrot.slane %v418, 4
    %v420 = vadd.f32 %v418, %v419
    %v421 = vrot.slane %v420, 2
    %v422 = vadd.f32 %v420, %v421
    %v423 = vrot.slane %v422, 1
    %v424 = vadd.f32 %v422, %v423
    %v425 = vsel %vm334, %v322, 0.0
    %v426 = vsel %vm334, %v323, 0.0
    %v427 = vadd.f32 %v425, %v426
    %v428 = vrot.slane %v427, 4
    %v429 = vadd.f32 %v427, %v428
    %v430 = vrot.slane %v429, 2
    %v431 = vadd.f32 %v429, %v430
    %v432 = vrot.slane %v431, 1
    %v433 = vadd.f32 %v431, %v432
    %v434 = vsel %vm334, %v324, 0.0
    %v435 = vsel %vm334, %v325, 0.0
    %v436 = vadd.f32 %v434, %v435
    %v437 = vrot.slane %v436, 4
    %v438 = vadd.f32 %v436, %v437
    %v439 = vrot.slane %v438, 2
    %v440 = vadd.f32 %v438, %v439
    %v441 = vrot.slane %v440, 1
    %v442 = vadd.f32 %v440, %v441
    %v443 = vsel %vm334, %v326, 0.0
    %v444 = vsel %vm334, %v327, 0.0
    %v445 = vadd.f32 %v443, %v444
    %v446 = vrot.slane %v445, 4
    %v447 = vadd.f32 %v445, %v446
    %v448 = vrot.slane %v447, 2
    %v449 = vadd.f32 %v447, %v448
    %v450 = vrot.slane %v449, 1
    %v451 = vadd.f32 %v449, %v450
    %v452 = vsel %vm334, %v328, 0.0
    %v453 = vsel %vm334, %v329, 0.0
    %v454 = vadd.f32 %v452, %v453
    %v455 = vrot.slane %v454, 4
    %v456 = vadd.f32 %v454, %v455
    %v457 = vrot.slane %v456, 2
    %v458 = vadd.f32 %v456, %v457
    %v459 = vrot.slane %v458, 1
    %v460 = vadd.f32 %v458, %v459
    %v461 = vsel %vm334, %v330, 0.0
    %v462 = vsel %vm334, %v331, 0.0
    %v463 = vadd.f32 %v461, %v462
    %v464 = vrot.slane %v463, 4
    %v465 = vadd.f32 %v463, %v464
    %v466 = vrot.slane %v465, 2
    %v467 = vadd.f32 %v465, %v466
    %v468 = vrot.slane %v467, 1
    %v469 = vadd.f32 %v467, %v468
    %v470 = vsel %vm334, %v332, 0.0
    %v471 = vsel %vm334, %v333, 0.0
    %v472 = vadd.f32 %v470, %v471
    %v473 = vrot.slane %v472, 4
    %v474 = vadd.f32 %v472, %v473
    %v475 = vrot.slane %v474, 2
    %v476 = vadd.f32 %v474, %v475
    %v477 = vrot.slane %v476, 1
    %v478 = vadd.f32 %v476, %v477
    %vm479 = vcmask 130048
    %v480 = vsel %vm479, %v92, 0.0
    %481 = vadd.xlane.f32.xlu0 %v480
    %v482 = vpop.xlane.xlu0 %481
    %v483 = vsel %vm479, %v93, 0.0
    %484 = vadd.xlane.f32.xlu0 %v483
    %v485 = vpop.xlane.xlu0 %484
    %v486 = vmax.f32 %v482, 1.0
    %v487 = vmax.f32 %v485, 1.0
    %v488 = vrcp.pop %v486
    %v489 = vrcp.pop %v487
    %v492 = vrot.slane %v488, 1
    %v493 = vrot.slane %v488, 2
    %v494 = vrot.slane %v488, 3
    %v495 = vrot.slane %v488, 4
    %v496 = vrot.slane %v488, 5
    %v497 = vrot.slane %v488, 6
    %v498 = vrot.slane %v488, 7
    %v499 = vrot.slane %v489, 1
    %v500 = vrot.slane %v489, 2
    %v501 = vrot.slane %v489, 3
    %v502 = vrot.slane %v489, 4
    %v503 = vrot.slane %v489, 5
    %v504 = vrot.slane %v489, 6
    %v505 = vrot.slane %v489, 7
    %v522 = vmul.f32 %v343, %v488
    %v523 = vmul.f32 %v352, %v492
    %v524 = vmul.f32 %v361, %v493
    %v525 = vmul.f32 %v370, %v494
    %v526 = vmul.f32 %v379, %v495
    %v527 = vmul.f32 %v388, %v496
    %v528 = vmul.f32 %v397, %v497
    %v529 = vmul.f32 %v406, %v498
    %v530 = vmul.f32 %v415, %v489
    %v531 = vmul.f32 %v424, %v499
    %v532 = vmul.f32 %v433, %v500
    %v533 = vmul.f32 %v442, %v501
    %v534 = vmul.f32 %v451, %v502
    %v535 = vmul.f32 %v460, %v503
    %v536 = vmul.f32 %v469, %v504
    %v537 = vmul.f32 %v478, %v505
    %v538 = vpack.c.bf16 %v522, %v522
    %v539 = vpack.c.bf16 %v523, %v523
    %v540 = vpack.c.bf16 %v524, %v524
    %v541 = vpack.c.bf16 %v525, %v525
    %v542 = vpack.c.bf16 %v526, %v526
    %v543 = vpack.c.bf16 %v527, %v527
    %v544 = vpack.c.bf16 %v528, %v528
    %v545 = vpack.c.bf16 %v529, %v529
    %v546 = vpack.c.bf16 %v530, %v530
    %v547 = vpack.c.bf16 %v531, %v531
    %v548 = vpack.c.bf16 %v532, %v532
    %v549 = vpack.c.bf16 %v533, %v533
    %v550 = vpack.c.bf16 %v534, %v534
    %v551 = vpack.c.bf16 %v535, %v535
    %v552 = vpack.c.bf16 %v536, %v536
    %v553 = vpack.c.bf16 %v537, %v537
    %v554 = vld [vmem:[#allocation7] sm:$0xf]
    %v555 = vld [vmem:[#allocation7 + $0x4] sm:$0xf]
    %v556 = vld [vmem:[#allocation7 + $0x8] sm:$0xf]
    %v557 = vld [vmem:[#allocation7 + $0xc] sm:$0xf]
    %v558 = vld [vmem:[%s3] sm:$0x1]
    %v560 = vlaneseq
    %v561 = vshrl.u32 %v560, 7
    %v562 = vsub.s32 0, %v561
    %v563 = vrot.slane %v558, %v562
    %v581 = vunpack.c.l.b16 %v538
    %v582 = vunpack.c.l.b16 %v539
    %v583 = vunpack.c.l.b16 %v540
    %v584 = vunpack.c.l.b16 %v541
    %v585 = vunpack.c.l.b16 %v542
    %v586 = vunpack.c.l.b16 %v543
    %v587 = vunpack.c.l.b16 %v544
    %v588 = vunpack.c.l.b16 %v545
    %v589 = vunpack.c.l.b16 %v546
    %v590 = vunpack.c.l.b16 %v547
    %v591 = vunpack.c.l.b16 %v548
    %v592 = vunpack.c.l.b16 %v549
    %v593 = vunpack.c.l.b16 %v550
    %v594 = vunpack.c.l.b16 %v551
    %v595 = vunpack.c.l.b16 %v552
    %v596 = vunpack.c.l.b16 %v553
    %v597 = vrot.slane %v582, 7
    %vm598 = vcmask 1041409
    %v599 = vsel %vm598, %v597, %v581
    %v600 = vrot.slane %v583, 6
    %vm601 = vcmask 1042434
    %v602 = vsel %vm601, %v600, %v599
    %v603 = vrot.slane %v584, 5
    %vm604 = vcmask 1043459
    %v605 = vsel %vm604, %v603, %v602
    %v606 = vrot.slane %v585, 4
    %vm607 = vcmask 1044484
    %v608 = vsel %vm607, %v606, %v605
    %v609 = vrot.slane %v586, 3
    %vm610 = vcmask 1045509
    %v611 = vsel %vm610, %v609, %v608
    %v612 = vrot.slane %v587, 2
    %vm613 = vcmask 1046534
    %v614 = vsel %vm613, %v612, %v611
    %v615 = vrot.slane %v588, 1
    %vm616 = vcmask 1047559
    %v617 = vsel %vm616, %v615, %v614
    %v618 = vrot.slane %v590, 7
    %v619 = vsel %vm598, %v618, %v589
    %v620 = vrot.slane %v591, 6
    %v621 = vsel %vm601, %v620, %v619
    %v622 = vrot.slane %v592, 5
    %v623 = vsel %vm604, %v622, %v621
    %v624 = vrot.slane %v593, 4
    %v625 = vsel %vm607, %v624, %v623
    %v626 = vrot.slane %v594, 3
    %v627 = vsel %vm610, %v626, %v625
    %v628 = vrot.slane %v595, 2
    %v629 = vsel %vm613, %v628, %v627
    %v630 = vrot.slane %v596, 1
    %v631 = vsel %vm616, %v630, %v629
    %v632 = vpack.c.b16 %v631, %v617
    %v637 = vunpack.c.l.b16 %v554
    %v638 = vunpack.c.l.b16 %v555
    %v639 = vunpack.c.l.b16 %v556
    %v640 = vunpack.c.l.b16 %v557
    %v641 = vpack.c.b16 %v638, %v637
    %v642 = vpack.c.b16 %v640, %v639
    %v646 = vsel %vm334, %v632, 0
    %648 = vmatprep.subr.bf16.mxu0 0
    %649 = vmatpush1.bf16.msra.mxu0 %v641
    %650 = vmatprep.subr.bf16.mxu0 0
    %651 = vmatpush1.bf16.msra.mxu0 %v642
    %652 = vmatprep.subr.bf16.mxu0 0
    %653 = vmatpush1.bf16.msra.mxu0 0
    %654 = vmatprep.subr.bf16.mxu0 0
    %655 = vmatpush1.bf16.msra.mxu0 0
    %656 = vmatprep.subr.bf16.mxu0 0
    %657 = vmatpush1.bf16.msra.mxu0 0
    %658 = vmatprep.subr.bf16.mxu0 0
    %659 = vmatpush1.bf16.msra.mxu0 0
    %660 = vmatprep.subr.bf16.mxu0 0
    %661 = vmatpush1.bf16.msra.mxu0 0
    %662 = vmatprep.subr.bf16.mxu0 0
    %663 = vmatpush1.bf16.msra.mxu0 0
    %664 = vmatprep.subr.bf16.mxu0 0
    %665 = vmatpush1.bf16.msra.mxu0 0
    %666 = vmatprep.subr.bf16.mxu0 0
    %667 = vmatpush1.bf16.msra.mxu0 0
    %668 = vmatprep.subr.bf16.mxu0 0
    %669 = vmatpush1.bf16.msra.mxu0 0
    %670 = vmatprep.subr.bf16.mxu0 0
    %671 = vmatpush1.bf16.msra.mxu0 0
    %672 = vmatprep.subr.bf16.mxu0 0
    %673 = vmatpush1.bf16.msra.mxu0 0
    %674 = vmatprep.subr.bf16.mxu0 0
    %675 = vmatpush1.bf16.msra.mxu0 0
    %676 = vmatprep.subr.bf16.mxu0 0
    %677 = vmatpush1.bf16.msra.mxu0 0
    %678 = vmatprep.subr.bf16.mxu0 0
    %679 = vmatpush1.bf16.msra.mxu0 0
    %680 = vmatprep.mubr.bf16.mxu0 0
    %681 = vmatmul.mubr.bf16.gmra.mrb[0].mxu0 %v646
    %v682 = vpop.f32.mrb[0].mxu0
    %v683 = vadd.f32 %v563, %v682
    %v684 = vpop.f32.mrb[0].mxu0
    %v685 = vpop.f32.mrb[0].mxu0
    %v686 = vadd.f32 %v563, %v685
    %v687 = vpop.f32.mrb[0].mxu0
    %688 = vdwg.mxu0
    %689 = vst [vmem:[#allocation8] sm:$0xff] %v683
    %690 = vst [vmem:[#allocation8 + $0x8] sm:$0xff] %v686
    // Predicated region
    $region30: #{tpu_custom_call.1} parent=1 // pred_check
      _
    $region31: #{tpu_custom_call.1} parent=1 // pred_check_branch
      %692 = sbr.rel (0) target = $region33
    $region32: #{tpu_custom_call.1} parent=1 // pred_region
      %s694 = ssub.s32 256, 256
      %695 = vsyncadd [#allocation4], %s694
      %s696 = sshll.u32 [#allocation8], 4
      %s697 = int_to_ptr.vmem [resolvable:$true] %s696
      %702 = dma.vmem_to_hbm [thread:$0]  %s697, 256, %s4, [#allocation4], 128, 128, 8
    $region33: #{tpu_custom_call.1} parent=1 // pred_fallthru
      _
    // Predicated region
    $region34: #{tpu_custom_call.1} parent=1 // pred_check
      _
    $region35: #{tpu_custom_call.1} parent=1 // pred_check_branch
      %704 = sbr.rel (0) target = $region37
    $region36: #{tpu_custom_call.1} parent=1 // pred_region
      %705 = dma.done [#allocation4], 256
    $region37: #{tpu_custom_call.1} parent=1 // pred_fallthru
      _
    %706 = vsyncpa [#allocation3], 1
    %707 = vsyncpa [#allocation6], 1
    %708 = vsyncpa [#allocation4], 1

</llo_original>
